<compile_context>
chip_gen: v7x
topology: tpu7x:2x2x1
jax: 0.10.0
libtpu: 0.0.40
codegen_flags: <defaults>
</compile_context>

<pallas_src>
import functools

import numpy as np

import jax
import jax.numpy as jnp
from jax.experimental import pallas as pl
from jax.experimental.pallas import tpu as pltpu


def _l2_normalize_kernel(x_ref, o_ref):
    x = x_ref[...].astype(jnp.float32)
    ss = jnp.sum(x * x, axis=-1, keepdims=True)
    o_ref[...] = (x * jax.lax.rsqrt(jnp.maximum(ss, 1e-24))).astype(o_ref.dtype)


def _pair_tile_kernel(ii_ref, jj_ref, ei_ref, ej_ref, lab_i_ref, lab_j_ref,
                      ps_ref, pc_ref, ns_ref, nc_ref,
                      *, pos_margin, neg_margin, tile, n_valid, padded,
                      n_blocks):
    tidx = pl.program_id(0)
    ib = ii_ref[tidx]
    jb = jj_ref[tidx]

    # ||e_i - e_j||^2 = 2 - 2 <e_i, e_j> for unit-norm rows (Gram on the MXU,
    # f32 accumulation regardless of the input feed dtype).
    gram = jax.lax.dot_general(
        ei_ref[...], ej_ref[...],
        dimension_numbers=(((1,), (1,)), ((), ())),
        preferred_element_type=jnp.float32)                       # (T, T)
    dist = jnp.sqrt(jnp.maximum(2.0 - 2.0 * gram, 0.0))

    same = lab_i_ref[...] == lab_j_ref[...]       # (T,1) == (1,T) -> (T,T)
    pos_raw = jnp.maximum(dist - pos_margin, 0.0)
    neg_raw = jnp.maximum(neg_margin - dist, 0.0)

    is_diag = ib == jb
    if padded:
        last = n_blocks - 1
        is_special = jnp.logical_or(
            is_diag, jnp.logical_or(ib == last, jb == last))
    else:
        is_special = is_diag

    def _reduce_and_store(pos_vals, neg_vals, weight):
        # Per-tile sublane (XLU) reductions into lane-dense (1, T) partials;
        # counts stay exact small integers in f32.
        ps_ref[0] = weight * jnp.sum(pos_vals, axis=0, keepdims=True)
        pc_ref[0] = weight * jnp.sum((pos_vals > 0.0).astype(jnp.float32),
                                     axis=0, keepdims=True)
        ns_ref[0] = weight * jnp.sum(neg_vals, axis=0, keepdims=True)
        nc_ref[0] = weight * jnp.sum((neg_vals > 0.0).astype(jnp.float32),
                                     axis=0, keepdims=True)

    @pl.when(jnp.logical_not(is_special))
    def _fast():  # off-diagonal, no padding: label mask only, weight 2.
        pos_vals = jnp.where(same, pos_raw, 0.0)
        neg_vals = jnp.where(same, 0.0, neg_raw)
        _reduce_and_store(pos_vals, neg_vals, 2.0)

    @pl.when(is_special)
    def _slow():  # diagonal and/or padded-edge tiles: full masks.
        r = ib * tile + jax.lax.broadcasted_iota(jnp.int32, (tile, tile), 0)
        c = jb * tile + jax.lax.broadcasted_iota(jnp.int32, (tile, tile), 1)
        pos_mask = jnp.logical_and(same, r != c)
        neg_mask = jnp.logical_not(same)
        if padded:
            valid = jnp.logical_and(r < n_valid, c < n_valid)
            pos_mask = jnp.logical_and(pos_mask, valid)
            neg_mask = jnp.logical_and(neg_mask, valid)
        pos_vals = jnp.where(pos_mask, pos_raw, 0.0)
        neg_vals = jnp.where(neg_mask, neg_raw, 0.0)
        weight = 2.0 - is_diag.astype(jnp.float32)   # 1 on diag, 2 off-diag
        _reduce_and_store(pos_vals, neg_vals, weight)


def _vmem_capacity_bytes():
    try:
        return int(pltpu.get_tpu_info().vmem_capacity_bytes)
    except Exception:
        return 64 * 1024 * 1024   # assume the smallest (v7x) when unknown


def _choose_tile(n, d, itemsize, budget):
    """Largest 128/256/512 tile that fits the budget, preferring >= 2 blocks."""
    n_grain = max(128, -(-n // 128) * 128)
    fitting = []
    for t in (512, 256, 128):
        if t > n_grain:
            continue
        # dbl-buffered (t,d) input blocks + compiler (t,t) temporaries + outs.
        est = 2 * 2 * t * d * itemsize + 8 * t * t * 4 + 8 * 4 * t * 4
        if est <= budget:
            fitting.append(t)
    if not fitting:
        return 128
    for t in fitting:              # prefer >= 2 row blocks (v7x 2-TC balance)
        if -(-n // t) >= 2:
            return t
    return fitting[0]


def combined_loss(embeddings, labels, *, pos_margin=0.0, neg_margin=1.0,
                  mxu_dtype=jnp.bfloat16):
    """CombinedLoss forward (ContrastiveLoss path). Returns a scalar float32.

    mxu_dtype=jnp.bfloat16 (default) feeds the MXU natively; use
    mxu_dtype=jnp.float32 for bit-tight agreement with an f32 reference.
    """
    n, d = embeddings.shape
    itemsize = jnp.dtype(mxu_dtype).itemsize
    vmem_cap = _vmem_capacity_bytes()
    tile_budget = min(vmem_cap * 7 // 10, 56 * 1024 * 1024)
    t = _choose_tile(n, d, itemsize, tile_budget)
    n_pad = -(-n // t) * t
    padded = n_pad != n

    x = embeddings.astype(jnp.float32)
    lab = labels.astype(jnp.int32)
    if padded:
        x = jnp.pad(x, ((0, n_pad - n), (0, 0)))
        lab = jnp.pad(lab, (0, n_pad - n), constant_values=-1)

    # --- 1) Hoisted L2 normalization (row-tiled, each row touched once). ---
    tn = min(t, 256)
    e = pl.pallas_call(
        _l2_normalize_kernel,
        out_shape=jax.ShapeDtypeStruct((n_pad, d), mxu_dtype),
        grid=(n_pad // tn,),
        in_specs=[pl.BlockSpec((tn, d), lambda i: (i, 0))],
        out_specs=pl.BlockSpec((tn, d), lambda i: (i, 0)),
        compiler_params=pltpu.CompilerParams(
            dimension_semantics=("parallel",)),
    )(x)

    lab_col = lab.reshape(n_pad, 1)   # labels twice: avoids in-kernel transpose
    lab_row = lab.reshape(1, n_pad)

    gi = n_pad // t
    tri = [(i, j) for i in range(gi) for j in range(i, gi)]   # upper triangle
    ntiles = len(tri)
    ii = jnp.asarray(np.array([p[0] for p in tri], dtype=np.int32))
    jj = jnp.asarray(np.array([p[1] for p in tri], dtype=np.int32))

    kernel = functools.partial(
        _pair_tile_kernel,
        pos_margin=float(pos_margin), neg_margin=float(neg_margin),
        tile=t, n_valid=n, padded=padded, n_blocks=gi)

    block_bytes = 2 * 2 * t * d * itemsize
    tmp_bytes = 8 * t * t * 4
    vmem_limit = int(min(vmem_cap * 3 // 4,
                         max(32 * 1024 * 1024, 2 * (block_bytes + tmp_bytes))))

    part_shape = jax.ShapeDtypeStruct((ntiles, 1, t), jnp.float32)
    part_spec = pl.BlockSpec((1, 1, t), lambda tt, ii_r, jj_r: (tt, 0, 0))

    # --- 2) Triangular pair kernel: 1-D grid over upper-triangle tiles. ---
    ps, pc, ns, nc = pl.pallas_call(
        kernel,
        out_shape=(part_shape, part_shape, part_shape, part_shape),
        grid_spec=pltpu.PrefetchScalarGridSpec(
            num_scalar_prefetch=2,
            grid=(ntiles,),
            in_specs=[
                pl.BlockSpec((t, d), lambda tt, ii_r, jj_r: (ii_r[tt], 0)),
                pl.BlockSpec((t, d), lambda tt, ii_r, jj_r: (jj_r[tt], 0)),
                pl.BlockSpec((t, 1), lambda tt, ii_r, jj_r: (ii_r[tt], 0)),
                pl.BlockSpec((1, t), lambda tt, ii_r, jj_r: (0, jj_r[tt])),
            ],
            out_specs=(part_spec, part_spec, part_spec, part_spec),
        ),
        compiler_params=pltpu.CompilerParams(
            dimension_semantics=("parallel",),
            vmem_limit_bytes=vmem_limit),
        cost_estimate=pl.CostEstimate(
            flops=2 * ntiles * t * t * d,
            transcendentals=ntiles * t * t,
            bytes_accessed=(ntiles + gi) * t * d * itemsize
                           + 4 * ntiles * t * 4 + 2 * n_pad * 4),
    )(ii, jj, e, e, lab_col, lab_row)

    # --- 3) Tiny final reduction + AvgNonZeroReducer in the wrapper. ---
    pos_sum = jnp.sum(ps)
    neg_sum = jnp.sum(ns)
    pos_cnt = jnp.sum(pc.astype(jnp.int32))   # partials are exact small ints
    neg_cnt = jnp.sum(nc.astype(jnp.int32))

    pos_term = jnp.where(
        pos_cnt > 0,
        pos_sum / jnp.maximum(pos_cnt.astype(jnp.float32), 1.0), 0.0)
    neg_term = jnp.where(
        neg_cnt > 0,
        neg_sum / jnp.maximum(neg_cnt.astype(jnp.float32), 1.0), 0.0)
    return pos_term + neg_term


def _reference_loss(embeddings, labels, pos_margin=0.0, neg_margin=1.0):
    x = embeddings.astype(jnp.float32)
    e = x / jnp.maximum(jnp.linalg.norm(x, axis=-1, keepdims=True), 1e-12)
    gram = jnp.dot(e, e.T, precision=jax.lax.Precision.HIGHEST)
    dist = jnp.sqrt(jnp.maximum(2.0 - 2.0 * gram, 0.0))
    same = labels[:, None] == labels[None, :]
    eye = jnp.eye(x.shape[0], dtype=bool)
    pos_l = jnp.where(same & ~eye, jnp.maximum(dist - pos_margin, 0.0), 0.0)
    neg_l = jnp.where(~same, jnp.maximum(neg_margin - dist, 0.0), 0.0)
    pos_cnt = jnp.sum(pos_l > 0)
    neg_cnt = jnp.sum(neg_l > 0)
    pos_term = jnp.where(pos_cnt > 0,
                         jnp.sum(pos_l) / jnp.maximum(pos_cnt, 1), 0.0)
    neg_term = jnp.where(neg_cnt > 0,
                         jnp.sum(neg_l) / jnp.maximum(neg_cnt, 1), 0.0)
    return pos_term + neg_term


if __name__ == "__main__":
    # Small deterministic example: batch=8, embedding_size=256, num_classes=2.
    # Embeddings are clustered around a shared direction so both the positive
    # and negative terms of the contrastive loss are exercised.
    key = jax.random.PRNGKey(0)
    k_base, k_noise = jax.random.split(key)
    N, D = 8, 256
    base = jax.random.normal(k_base, (1, D), dtype=jnp.float32)
    noise = jax.random.normal(k_noise, (N, D), dtype=jnp.float32)
    embeddings = base + 0.3 * noise
    labels = jnp.array([0, 1, 0, 1, 0, 1, 0, 1], dtype=jnp.int32)

    ref = jax.block_until_ready(
        _reference_loss(embeddings, labels, pos_margin=0.0, neg_margin=1.0))

    # Exact path (f32 MXU feed): tight tolerance vs. the f32 reference.
    loss_f32 = jax.block_until_ready(
        combined_loss(embeddings, labels, pos_margin=0.0, neg_margin=1.0,
                      mxu_dtype=jnp.float32))
    assert jnp.isfinite(loss_f32)
    assert jnp.allclose(loss_f32, ref, rtol=1e-4, atol=1e-4), (loss_f32, ref)

    # Default fast path (bf16 MXU feed): looser tolerance (bf16 quantization
    # of the normalized embeddings; Gram still accumulated in f32).
    loss_bf16 = jax.block_until_ready(
        combined_loss(embeddings, labels, pos_margin=0.0, neg_margin=1.0))
    assert jnp.isfinite(loss_bf16)
    assert jnp.allclose(loss_bf16, ref, rtol=3e-2, atol=3e-2), (loss_bf16, ref)

    print("KERNEL_OK")
</pallas_src>

<mosaic_0001>
module attributes {stable_mosaic.version = 11 : i64} {
  func.func @_l2_normalize_kernel(%arg0: i32, %arg1: memref<128x256xf32, #tpu.memory_space<vmem>>, %arg2: memref<128x256xf32, #tpu.memory_space<vmem>>) attributes {dimension_semantics = [#tpu.dimension_semantics<parallel>], iteration_bounds = array<i64: 1>, scalar_prefetch = 0 : i64, scratch_operands = 0 : i64, tpu.core_type = #tpu.core_type<tc>, window_params = [{transform_indices = @transform_0, window_bounds = array<i64: 128, 256>}, {transform_indices = @transform_1, window_bounds = array<i64: 128, 256>}]} {
    %c0 = arith.constant 0 : index
    %c0_0 = arith.constant 0 : index
    %0 = vector.load %arg1[%c0, %c0_0] : memref<128x256xf32, #tpu.memory_space<vmem>>, vector<128x256xf32>
    %1 = arith.mulf %0, %0 : vector<128x256xf32>
    %cst = arith.constant dense<0.000000e+00> : vector<128xf32>
    %2 = vector.multi_reduction <add>, %1, %cst [1] : vector<128x256xf32> to vector<128xf32>
    %3 = vector.shape_cast %2 : vector<128xf32> to vector<128x1xf32>
    %cst_1 = arith.constant 1.000000e-24 : f32
    %4 = vector.broadcast %cst_1 : f32 to vector<128x1xf32>
    %5 = arith.maximumf %3, %4 : vector<128x1xf32>
    %6 = math.rsqrt %5 : vector<128x1xf32>
    %7 = vector.broadcast %6 : vector<128x1xf32> to vector<128x256xf32>
    %8 = arith.mulf %0, %7 : vector<128x256xf32>
    %c0_2 = arith.constant 0 : index
    %c0_3 = arith.constant 0 : index
    %9 = vector.load %arg2[%c0_2, %c0_3] : memref<128x256xf32, #tpu.memory_space<vmem>>, vector<128x256xf32>
    tpu.vector_store %arg2[%c0_2, %c0_3], %8 {strides = array<i32>} : memref<128x256xf32, #tpu.memory_space<vmem>>, vector<128x256xf32>,
    return
  }
  func.func @transform_0(%arg0: i32) -> (i32, i32) {
    %c0_i32 = arith.constant 0 : i32
    %c0_i32_0 = arith.constant 0 : i32
    return %arg0, %c0_i32 : i32, i32
  }
  func.func @transform_1(%arg0: i32) -> (i32, i32) {
    %c0_i32 = arith.constant 0 : i32
    %c0_i32_0 = arith.constant 0 : i32
    return %arg0, %c0_i32 : i32, i32
  }
}

</mosaic_0001>

<llo_original>
// kernel: tpu_custom_call.1
$region0: #{tpu_custom_call.1}
  #allocation0 [shape = 'u32[]', space=smem, size = 0x4, offset = 0x4, fixed_abs, tag = 'smem constant byte address 0x4 - core index']
  #allocation1 [shape = 'u32[144,128]{1,0:T(1,128)}', space=vmem, size = 0x12000, scoped, tag = 'internal scratch']
  %s0 = inlined_call_operand.hbm [shape: f32[128,256], index: 0, kind: input, shape index: {}]
  %s1 = inlined_call_operand.hbm [shape: f32[128,256], index: 1, kind: output, shape index: {}]
  %s2 = sld [smem:[#allocation0]]
  $region18: #{tpu_custom_call.1} parent=0
    _
  %s4 = ssub.s32 1, %s2
  %s5 = scalar_select 0, %s4, %s2
  $region1: #{tpu_custom_call.1} parent=0
    #allocation2 [shape = 'u8[131072]{0}', space=vmem, size = 0x20000, scoped, tag = 'input window, operand 0, single buffered']
    #allocation3 [shape = 's32[1]{0}', space=sflag, size = 0x4, scoped, tag = 'scoped memory for tpu_custom_call.1']
    #allocation4 [shape = 's32[1]{0}', space=sflag, size = 0x4, scoped, tag = 'scoped memory for tpu_custom_call.1']
    #allocation5 [shape = 'u8[131072]{0}', space=vmem, size = 0x20000, scoped, tag = 'output window, operand 0, single buffered']
    %6 = vsyncpa [#allocation3], 0
    %7 = vsyncpa [#allocation4], 0
    // Predicated region
    $region2: #{tpu_custom_call.1} parent=1 // pred_check
      _
    $region3: #{tpu_custom_call.1} parent=1 // pred_check_branch
      %9 = sbr.rel (0) target = $region5
    $region4: #{tpu_custom_call.1} parent=1 // pred_region
      %s11 = ssub.s32 4096, 4096
      %12 = vsyncadd [#allocation3], %s11
      %s13 = sshll.u32 [#allocation2], 4
      %s14 = int_to_ptr.vmem [resolvable:$true] %s13
      %19 = dma.hbm_to_vmem [thread:$0]  %s0, 4096, %s14, [#allocation3], 256, 256, 16
    $region5: #{tpu_custom_call.1} parent=1 // pred_fallthru
      _
    // Predicated region
    $region6: #{tpu_custom_call.1} parent=1 // pred_check
      _
    $region7: #{tpu_custom_call.1} parent=1 // pred_check_branch
      %21 = sbr.rel (0) target = $region9
    $region8: #{tpu_custom_call.1} parent=1 // pred_region
      %22 = dma.done [#allocation3], 4096
    $region9: #{tpu_custom_call.1} parent=1 // pred_fallthru
      _
    %v23 = vld [vmem:[#allocation2] sm:$0xff]
    %v24 = vld [vmem:[#allocation2 + $0x8] sm:$0xff]
    %v25 = vld [vmem:[#allocation2 + $0x10] sm:$0xff]
    %v26 = vld [vmem:[#allocation2 + $0x18] sm:$0xff]
    %v27 = vld [vmem:[#allocation2 + $0x20] sm:$0xff]
    %v28 = vld [vmem:[#allocation2 + $0x28] sm:$0xff]
    %v29 = vld [vmem:[#allocation2 + $0x30] sm:$0xff]
    %v30 = vld [vmem:[#allocation2 + $0x38] sm:$0xff]
    %v31 = vld [vmem:[#allocation2 + $0x40] sm:$0xff]
    %v32 = vld [vmem:[#allocation2 + $0x48] sm:$0xff]
    %v33 = vld [vmem:[#allocation2 + $0x50] sm:$0xff]
    %v34 = vld [vmem:[#allocation2 + $0x58] sm:$0xff]
    %v35 = vld [vmem:[#allocation2 + $0x60] sm:$0xff]
    %v36 = vld [vmem:[#allocation2 + $0x68] sm:$0xff]
    %v37 = vld [vmem:[#allocation2 + $0x70] sm:$0xff]
    %v38 = vld [vmem:[#allocation2 + $0x78] sm:$0xff]
    %v39 = vld [vmem:[#allocation2 + $0x80] sm:$0xff]
    %v40 = vld [vmem:[#allocation2 + $0x88] sm:$0xff]
    %v41 = vld [vmem:[#allocation2 + $0x90] sm:$0xff]
    %v42 = vld [vmem:[#allocation2 + $0x98] sm:$0xff]
    %v43 = vld [vmem:[#allocation2 + $0xa0] sm:$0xff]
    %v44 = vld [vmem:[#allocation2 + $0xa8] sm:$0xff]
    %v45 = vld [vmem:[#allocation2 + $0xb0] sm:$0xff]
    %v46 = vld [vmem:[#allocation2 + $0xb8] sm:$0xff]
    %v47 = vld [vmem:[#allocation2 + $0xc0] sm:$0xff]
    %v48 = vld [vmem:[#allocation2 + $0xc8] sm:$0xff]
    %v49 = vld [vmem:[#allocation2 + $0xd0] sm:$0xff]
    %v50 = vld [vmem:[#allocation2 + $0xd8] sm:$0xff]
    %v51 = vld [vmem:[#allocation2 + $0xe0] sm:$0xff]
    %v52 = vld [vmem:[#allocation2 + $0xe8] sm:$0xff]
    %v53 = vld [vmem:[#allocation2 + $0xf0] sm:$0xff]
    %v54 = vld [vmem:[#allocation2 + $0xf8] sm:$0xff]
    %v55 = vmul.f32 %v23, %v23
    %v56 = vmul.f32 %v24, %v24
    %v57 = vmul.f32 %v25, %v25
    %v58 = vmul.f32 %v26, %v26
    %v59 = vmul.f32 %v27, %v27
    %v60 = vmul.f32 %v28, %v28
    %v61 = vmul.f32 %v29, %v29
    %v62 = vmul.f32 %v30, %v30
    %v63 = vmul.f32 %v31, %v31
    %v64 = vmul.f32 %v32, %v32
    %v65 = vmul.f32 %v33, %v33
    %v66 = vmul.f32 %v34, %v34
    %v67 = vmul.f32 %v35, %v35
    %v68 = vmul.f32 %v36, %v36
    %v69 = vmul.f32 %v37, %v37
    %v70 = vmul.f32 %v38, %v38
    %v71 = vmul.f32 %v39, %v39
    %v72 = vmul.f32 %v40, %v40
    %v73 = vmul.f32 %v41, %v41
    %v74 = vmul.f32 %v42, %v42
    %v75 = vmul.f32 %v43, %v43
    %v76 = vmul.f32 %v44, %v44
    %v77 = vmul.f32 %v45, %v45
    %v78 = vmul.f32 %v46, %v46
    %v79 = vmul.f32 %v47, %v47
    %v80 = vmul.f32 %v48, %v48
    %v81 = vmul.f32 %v49, %v49
    %v82 = vmul.f32 %v50, %v50
    %v83 = vmul.f32 %v51, %v51
    %v84 = vmul.f32 %v52, %v52
    %v85 = vmul.f32 %v53, %v53
    %v86 = vmul.f32 %v54, %v54
    %v87 = vadd.f32 %v55, %v56
    %88 = vadd.xlane.f32.xlu0 %v87
    %v89 = vpop.xlane.xlu0 %88
    %v90 = vadd.f32 %v57, %v58
    %91 = vadd.xlane.f32.xlu0 %v90
    %v92 = vpop.xlane.xlu0 %91
    %v93 = vadd.f32 %v59, %v60
    %94 = vadd.xlane.f32.xlu0 %v93
    %v95 = vpop.xlane.xlu0 %94
    %v96 = vadd.f32 %v61, %v62
    %97 = vadd.xlane.f32.xlu0 %v96
    %v98 = vpop.xlane.xlu0 %97
    %v99 = vadd.f32 %v63, %v64
    %100 = vadd.xlane.f32.xlu0 %v99
    %v101 = vpop.xlane.xlu0 %100
    %v102 = vadd.f32 %v65, %v66
    %103 = vadd.xlane.f32.xlu0 %v102
    %v104 = vpop.xlane.xlu0 %103
    %v105 = vadd.f32 %v67, %v68
    %106 = vadd.xlane.f32.xlu0 %v105
    %v107 = vpop.xlane.xlu0 %106
    %v108 = vadd.f32 %v69, %v70
    %109 = vadd.xlane.f32.xlu0 %v108
    %v110 = vpop.xlane.xlu0 %109
    %v111 = vadd.f32 %v71, %v72
    %112 = vadd.xlane.f32.xlu0 %v111
    %v113 = vpop.xlane.xlu0 %112
    %v114 = vadd.f32 %v73, %v74
    %115 = vadd.xlane.f32.xlu0 %v114
    %v116 = vpop.xlane.xlu0 %115
    %v117 = vadd.f32 %v75, %v76
    %118 = vadd.xlane.f32.xlu0 %v117
    %v119 = vpop.xlane.xlu0 %118
    %v120 = vadd.f32 %v77, %v78
    %121 = vadd.xlane.f32.xlu0 %v120
    %v122 = vpop.xlane.xlu0 %121
    %v123 = vadd.f32 %v79, %v80
    %124 = vadd.xlane.f32.xlu0 %v123
    %v125 = vpop.xlane.xlu0 %124
    %v126 = vadd.f32 %v81, %v82
    %127 = vadd.xlane.f32.xlu0 %v126
    %v128 = vpop.xlane.xlu0 %127
    %v129 = vadd.f32 %v83, %v84
    %130 = vadd.xlane.f32.xlu0 %v129
    %v131 = vpop.xlane.xlu0 %130
    %v132 = vadd.f32 %v85, %v86
    %133 = vadd.xlane.f32.xlu0 %v132
    %v134 = vpop.xlane.xlu0 %133
    %v135 = vmax.f32 %v89, 1e-24
    %v136 = vmax.f32 %v92, 1e-24
    %v137 = vmax.f32 %v95, 1e-24
    %v138 = vmax.f32 %v98, 1e-24
    %v139 = vmax.f32 %v101, 1e-24
    %v140 = vmax.f32 %v104, 1e-24
    %v141 = vmax.f32 %v107, 1e-24
    %v142 = vmax.f32 %v110, 1e-24
    %v143 = vmax.f32 %v113, 1e-24
    %v144 = vmax.f32 %v116, 1e-24
    %v145 = vmax.f32 %v119, 1e-24
    %v146 = vmax.f32 %v122, 1e-24
    %v147 = vmax.f32 %v125, 1e-24
    %v148 = vmax.f32 %v128, 1e-24
    %v149 = vmax.f32 %v131, 1e-24
    %v150 = vmax.f32 %v134, 1e-24
    %v151 = vrsqrt.pop %v135
    %v152 = vrsqrt.pop %v136
    %v153 = vrsqrt.pop %v137
    %v154 = vrsqrt.pop %v138
    %v155 = vrsqrt.pop %v139
    %v156 = vrsqrt.pop %v140
    %v157 = vrsqrt.pop %v141
    %v158 = vrsqrt.pop %v142
    %v159 = vrsqrt.pop %v143
    %v160 = vrsqrt.pop %v144
    %v161 = vrsqrt.pop %v145
    %v162 = vrsqrt.pop %v146
    %v163 = vrsqrt.pop %v147
    %v164 = vrsqrt.pop %v148
    %v165 = vrsqrt.pop %v149
    %v166 = vrsqrt.pop %v150
    %v167 = vmul.f32 %v23, %v151
    %v168 = vmul.f32 %v24, %v151
    %v169 = vmul.f32 %v25, %v152
    %v170 = vmul.f32 %v26, %v152
    %v171 = vmul.f32 %v27, %v153
    %v172 = vmul.f32 %v28, %v153
    %v173 = vmul.f32 %v29, %v154
    %v174 = vmul.f32 %v30, %v154
    %v175 = vmul.f32 %v31, %v155
    %v176 = vmul.f32 %v32, %v155
    %v177 = vmul.f32 %v33, %v156
    %v178 = vmul.f32 %v34, %v156
    %v179 = vmul.f32 %v35, %v157
    %v180 = vmul.f32 %v36, %v157
    %v181 = vmul.f32 %v37, %v158
    %v182 = vmul.f32 %v38, %v158
    %v183 = vmul.f32 %v39, %v159
    %v184 = vmul.f32 %v40, %v159
    %v185 = vmul.f32 %v41, %v160
    %v186 = vmul.f32 %v42, %v160
    %v187 = vmul.f32 %v43, %v161
    %v188 = vmul.f32 %v44, %v161
    %v189 = vmul.f32 %v45, %v162
    %v190 = vmul.f32 %v46, %v162
    %v191 = vmul.f32 %v47, %v163
    %v192 = vmul.f32 %v48, %v163
    %v193 = vmul.f32 %v49, %v164
    %v194 = vmul.f32 %v50, %v164
    %v195 = vmul.f32 %v51, %v165
    %v196 = vmul.f32 %v52, %v165
    %v197 = vmul.f32 %v53, %v166
    %v198 = vmul.f32 %v54, %v166
    %199 = vst [vmem:[#allocation5] sm:$0xff] %v167
    %200 = vst [vmem:[#allocation5 + $0x8] sm:$0xff] %v168
    %201 = vst [vmem:[#allocation5 + $0x10] sm:$0xff] %v169
    %202 = vst [vmem:[#allocation5 + $0x18] sm:$0xff] %v170
    %203 = vst [vmem:[#allocation5 + $0x20] sm:$0xff] %v171
    %204 = vst [vmem:[#allocation5 + $0x28] sm:$0xff] %v172
    %205 = vst [vmem:[#allocation5 + $0x30] sm:$0xff] %v173
    %206 = vst [vmem:[#allocation5 + $0x38] sm:$0xff] %v174
    %207 = vst [vmem:[#allocation5 + $0x40] sm:$0xff] %v175
    %208 = vst [vmem:[#allocation5 + $0x48] sm:$0xff] %v176
    %209 = vst [vmem:[#allocation5 + $0x50] sm:$0xff] %v177
    %210 = vst [vmem:[#allocation5 + $0x58] sm:$0xff] %v178
    %211 = vst [vmem:[#allocation5 + $0x60] sm:$0xff] %v179
    %212 = vst [vmem:[#allocation5 + $0x68] sm:$0xff] %v180
    %213 = vst [vmem:[#allocation5 + $0x70] sm:$0xff] %v181
    %214 = vst [vmem:[#allocation5 + $0x78] sm:$0xff] %v182
    %215 = vst [vmem:[#allocation5 + $0x80] sm:$0xff] %v183
    %216 = vst [vmem:[#allocation5 + $0x88] sm:$0xff] %v184
    %217 = vst [vmem:[#allocation5 + $0x90] sm:$0xff] %v185
    %218 = vst [vmem:[#allocation5 + $0x98] sm:$0xff] %v186
    %219 = vst [vmem:[#allocation5 + $0xa0] sm:$0xff] %v187
    %220 = vst [vmem:[#allocation5 + $0xa8] sm:$0xff] %v188
    %221 = vst [vmem:[#allocation5 + $0xb0] sm:$0xff] %v189
    %222 = vst [vmem:[#allocation5 + $0xb8] sm:$0xff] %v190
    %223 = vst [vmem:[#allocation5 + $0xc0] sm:$0xff] %v191
    %224 = vst [vmem:[#allocation5 + $0xc8] sm:$0xff] %v192
    %225 = vst [vmem:[#allocation5 + $0xd0] sm:$0xff] %v193
    %226 = vst [vmem:[#allocation5 + $0xd8] sm:$0xff] %v194
    %227 = vst [vmem:[#allocation5 + $0xe0] sm:$0xff] %v195
    %228 = vst [vmem:[#allocation5 + $0xe8] sm:$0xff] %v196
    %229 = vst [vmem:[#allocation5 + $0xf0] sm:$0xff] %v197
    %230 = vst [vmem:[#allocation5 + $0xf8] sm:$0xff] %v198
    // Predicated region
    $region10: #{tpu_custom_call.1} parent=1 // pred_check
      _
    $region11: #{tpu_custom_call.1} parent=1 // pred_check_branch
      %232 = sbr.rel (0) target = $region13
    $region12: #{tpu_custom_call.1} parent=1 // pred_region
      %s234 = ssub.s32 4096, 4096
      %235 = vsyncadd [#allocation4], %s234
      %s236 = sshll.u32 [#allocation5], 4
      %s237 = int_to_ptr.vmem [resolvable:$true] %s236
      %242 = dma.vmem_to_hbm [thread:$0]  %s237, 4096, %s1, [#allocation4], 256, 256, 16
    $region13: #{tpu_custom_call.1} parent=1 // pred_fallthru
      _
    // Predicated region
    $region14: #{tpu_custom_call.1} parent=1 // pred_check
      _
    $region15: #{tpu_custom_call.1} parent=1 // pred_check_branch
      %244 = sbr.rel (0) target = $region17
    $region16: #{tpu_custom_call.1} parent=1 // pred_region
      %245 = dma.done [#allocation4], 4096
    $region17: #{tpu_custom_call.1} parent=1 // pred_fallthru
      _
    %246 = vsyncpa [#allocation3], 1
    %247 = vsyncpa [#allocation4], 1

</llo_original>
